<compile_context>
chip_gen: v7x
topology: tpu7x:2x2x1
jax: 0.10.0
libtpu: 0.0.40
codegen_flags: <defaults>
</compile_context>

<pallas_src>
import functools

import jax
import jax.numpy as jnp
from jax.experimental import pallas as pl
from jax.experimental.pallas import tpu as pltpu

_LANES = 128
# ~1 MiB of f32 per operand per grid step (C * TM * 128 elements).
_TARGET_TILE_ELEMS = 256 * 1024


def _cdiv(a, b):
    return -(-a // b)


def _make_dice_kernel(num_classes, tm, hw, use_softmax, needs_mask):
    C = num_classes
    n_chunks = tm // 8   # tm is always a multiple of 8 (wrapper guarantees it)

    def kernel(pred_ref, targ_ref, inter_ref, union_ref):
        j = pl.program_id(1)

        @pl.when(j == 0)
        def _init():
            inter_ref[...] = jnp.zeros_like(inter_ref)
            union_ref[...] = jnp.zeros_like(union_ref)

        x = pred_ref[...].astype(jnp.float32)   # (C, TM, 128) logits
        t = targ_ref[...].astype(jnp.float32)   # (C, TM, 128)

        # Channel softmax / sigmoid as unrolled elementwise ops over the C
        # leading planes: full-vreg VPU/EUP work, no sublane reduces.
        if use_softmax:
            m = x[0]
            for c in range(1, C):
                m = jnp.maximum(m, x[c])
            es = [jnp.exp(x[c] - m) for c in range(C)]
            s = es[0]
            for c in range(1, C):
                s = s + es[c]
            inv = pl.reciprocal(s, approx=False)   # EUP; frees VALU slots
            probs = [es[c] * inv for c in range(C)]
        else:
            probs = [jax.nn.sigmoid(x[0])]

        def accumulate(valid):
            # Tree-fold TM sublane-rows down to a single (8, 128) partial per
            # class (vreg-aligned static slices -> pure VPU adds), then one
            # small RMW on the per-class accumulator/output refs.
            for c in range(C):
                pc = probs[c]
                tc = t[c]
                si = None
                su = None
                for k in range(n_chunks):
                    sl = slice(k * 8, (k + 1) * 8)
                    pck = pc[sl]
                    tck = tc[sl]
                    ptk = pck * tck
                    puk = pck + tck
                    if valid is not None:
                        # Target is zero-padded, so the intersection term is
                        # already zero in the padded region; only the union
                        # term needs masking.
                        puk = jnp.where(valid[sl], puk, 0.0)
                    si = ptk if si is None else si + ptk
                    su = puk if su is None else su + puk
                inter_ref[c] += si
                union_ref[c] += su

        if needs_mask:
            # Padding only exists in the last spatial tile; keep the mask off
            # the hot path.
            is_last = j == pl.num_programs(1) - 1

            @pl.when(jnp.logical_not(is_last))
            def _hot():
                accumulate(None)

            @pl.when(is_last)
            def _tail():
                row = jax.lax.broadcasted_iota(jnp.int32, (tm, _LANES), 0)
                lane = jax.lax.broadcasted_iota(jnp.int32, (tm, _LANES), 1)
                flat = (j * tm + row) * _LANES + lane
                accumulate(flat < hw)
        else:
            accumulate(None)

    return kernel


@functools.partial(jax.jit, static_argnames=("smooth", "tile_elems"))
def dice_loss(pred, target, smooth=1.0, tile_elems=_TARGET_TILE_ELEMS):
    """Pallas TPU implementation of DiceLoss.forward (PyTorch semantics)."""
    if target.ndim == 4 and target.shape[1] != pred.shape[1]:
        # TODO(synk): on bandwidth-bound v5e the NHWC target could be consumed
        # directly (separate BlockSpec + in-kernel XLU transpose) to skip this
        # extra HBM pass; kept as an XLA transpose for simplicity.
        target = jnp.transpose(target, (0, 3, 1, 2))

    B = int(pred.shape[0])
    C = int(pred.shape[1])
    hw = 1
    for d in pred.shape[2:]:
        hw *= int(d)

    pred3 = pred.reshape(B, C, hw)
    targ3 = target.reshape(B, C, hw)

    # Sublane-dense tiling: flattened spatial axis -> (rows, 128), rows tiled
    # by TM (multiple of 8) so vregs are fully packed regardless of C.
    r_raw = _cdiv(hw, _LANES)
    tm_target = max(8, min(2048, (tile_elems // (C * _LANES)) // 8 * 8))
    nt = 1 if r_raw <= tm_target else _cdiv(r_raw, tm_target)
    tm = _cdiv(_cdiv(r_raw, nt), 8) * 8
    rows = nt * tm
    hwp = rows * _LANES
    needs_mask = hwp != hw

    if needs_mask:
        pad = hwp - hw
        pred3 = jnp.pad(pred3, ((0, 0), (0, 0), (0, pad)))
        targ3 = jnp.pad(targ3, ((0, 0), (0, 0), (0, pad)))

    pred4 = pred3.reshape(B, C, rows, _LANES)
    targ4 = targ3.reshape(B, C, rows, _LANES)

    kernel = _make_dice_kernel(C, tm, hw, C > 1, needs_mask)

    out_sds = jax.ShapeDtypeStruct((B, C, 8, _LANES), jnp.float32)
    inter_p, union_p = pl.pallas_call(
        kernel,
        out_shape=(out_sds, out_sds),
        grid_spec=pltpu.PrefetchScalarGridSpec(
            num_scalar_prefetch=0,
            grid=(B, nt),
            in_specs=[
                pl.BlockSpec((None, C, tm, _LANES), lambda b, j: (b, 0, j, 0)),
                pl.BlockSpec((None, C, tm, _LANES), lambda b, j: (b, 0, j, 0)),
            ],
            out_specs=[
                pl.BlockSpec((None, C, 8, _LANES), lambda b, j: (b, 0, 0, 0)),
                pl.BlockSpec((None, C, 8, _LANES), lambda b, j: (b, 0, 0, 0)),
            ],
        ),
        compiler_params=pltpu.CompilerParams(
            # Batch axis is parallel (on v7x megacore splits it across the two
            # TensorCores; each batch's reduction and partial-output block are
            # self-contained). Spatial tiles form the sequential reduction.
            dimension_semantics=("parallel", "arbitrary"),
            vmem_limit_bytes=32 * 1024 * 1024,
        ),
    )(pred4, targ4)

    inter = jnp.sum(inter_p, axis=(0, 2, 3))   # (C,)
    union = jnp.sum(union_p, axis=(0, 2, 3))   # (C,)
    dice = (2.0 * inter + smooth) / (union + smooth)
    return 1.0 - jnp.mean(dice)


def _reference_dice_loss(pred, target, smooth=1.0):
    pred = pred.astype(jnp.float32)
    target = target.astype(jnp.float32)
    if target.ndim == 4 and target.shape[1] != pred.shape[1]:
        target = jnp.transpose(target, (0, 3, 1, 2))
    C = pred.shape[1]
    p = jax.nn.softmax(pred, axis=1) if C > 1 else jax.nn.sigmoid(pred)
    dices = []
    for i in range(C):
        pc = p[:, i, ...]
        tc = target[:, i, ...]
        inter = jnp.sum(pc * tc)
        union = jnp.sum(pc) + jnp.sum(tc)
        dices.append((2.0 * inter + smooth) / (union + smooth))
    return 1.0 - sum(dices) / C


if __name__ == "__main__":
    key = jax.random.PRNGKey(0)
    k1, k2, k3, k4, k5, k6 = jax.random.split(key, 6)

    # 1) Multi-class: NCHW logits, one-hot target in NHWC (exercises the
    #    permute branch, the softmax path, and the padded-tail mask).
    B, C, H, W = 2, 4, 16, 16
    pred_mc = jax.random.normal(k1, (B, C, H, W), dtype=jnp.float32)
    labels = jax.random.randint(k2, (B, H, W), 0, C)
    target_mc = jax.nn.one_hot(labels, C, dtype=jnp.float32)   # (B, H, W, C)

    loss_mc = jax.block_until_ready(dice_loss(pred_mc, target_mc))
    ref_mc = jax.block_until_ready(_reference_dice_loss(pred_mc, target_mc))
    assert jnp.allclose(loss_mc, ref_mc, atol=2e-5, rtol=1e-5), (loss_mc, ref_mc)

    # 2) Binary: single channel -> sigmoid path (now fully vreg-packed).
    pred_bin = jax.random.normal(k3, (B, 1, H, W), dtype=jnp.float32)
    target_bin = (jax.random.uniform(k4, (B, 1, H, W)) > 0.5).astype(jnp.float32)

    loss_bin = jax.block_until_ready(dice_loss(pred_bin, target_bin))
    ref_bin = jax.block_until_ready(_reference_dice_loss(pred_bin, target_bin))
    assert jnp.allclose(loss_bin, ref_bin, atol=2e-5, rtol=1e-5), (loss_bin, ref_bin)

    # 3) Ragged, multi-tile, multi-batch: forces nt > 1 (tiny forced tile) and
    #    a ragged spatial tail, exercising the init/accumulate/last-tile-mask
    #    gating and the per-batch partial outputs.
    C3, H3, W3 = 3, 65, 63
    pred_rg = jax.random.normal(k5, (B, C3, H3, W3), dtype=jnp.float32)
    labels_rg = jax.random.randint(k6, (B, H3, W3), 0, C3)
    target_rg = jnp.moveaxis(jax.nn.one_hot(labels_rg, C3, dtype=jnp.float32),
                             -1, 1)                       # (B, C3, H3, W3)

    loss_rg = jax.block_until_ready(
        dice_loss(pred_rg, target_rg, tile_elems=C3 * 8 * 128))
    ref_rg = jax.block_until_ready(_reference_dice_loss(pred_rg, target_rg))
    assert jnp.allclose(loss_rg, ref_rg, atol=2e-5, rtol=1e-5), (loss_rg, ref_rg)

    print("KERNEL_OK")
</pallas_src>

<mosaic_0001>
module attributes {stable_mosaic.version = 11 : i64} {
  func.func @kernel(%arg0: i32, %arg1: i32, %arg2: memref<1x4x8x128xf32, #tpu.memory_space<vmem>>, %arg3: memref<1x4x8x128xf32, #tpu.memory_space<vmem>>, %arg4: memref<1x4x8x128xf32, #tpu.memory_space<vmem>>, %arg5: memref<1x4x8x128xf32, #tpu.memory_space<vmem>>) attributes {dimension_semantics = [#tpu.dimension_semantics<parallel>, #tpu.dimension_semantics<arbitrary>], iteration_bounds = array<i64: 2, 1>, scalar_prefetch = 0 : i64, scratch_operands = 0 : i64, tpu.core_type = #tpu.core_type<tc>, window_params = [{transform_indices = @transform_0, window_bounds = array<i64: 1, 4, 8, 128>}, {transform_indices = @transform_1, window_bounds = array<i64: 1, 4, 8, 128>}, {transform_indices = @transform_2, window_bounds = array<i64: 1, 4, 8, 128>}, {transform_indices = @transform_3, window_bounds = array<i64: 1, 4, 8, 128>}]} {
    %c0_i32 = arith.constant 0 : i32
    %0 = arith.cmpi eq, %arg1, %c0_i32 : i32
    %1 = arith.extui %0 : i1 to i32
    %c0_i32_0 = arith.constant 0 : i32
    %2 = arith.cmpi ne, %1, %c0_i32_0 : i32
    scf.if %2 {
      %cst = arith.constant 0.000000e+00 : f32
      %48 = vector.broadcast %cst : f32 to vector<4x8x128xf32>
      %c0_11 = arith.constant 0 : index
      %c0_12 = arith.constant 0 : index
      %c0_13 = arith.constant 0 : index
      %c0_14 = arith.constant 0 : index
      %49 = vector.load %arg4[%c0_11, %c0_12, %c0_13, %c0_14] : memref<1x4x8x128xf32, #tpu.memory_space<vmem>>, vector<1x4x8x128xf32>
      %50 = vector.shape_cast %49 : vector<1x4x8x128xf32> to vector<4x8x128xf32>
      %51 = vector.shape_cast %48 : vector<4x8x128xf32> to vector<1x4x8x128xf32>
      tpu.vector_store %arg4[%c0_11, %c0_12, %c0_13, %c0_14], %51 {strides = array<i32>} : memref<1x4x8x128xf32, #tpu.memory_space<vmem>>, vector<1x4x8x128xf32>,
      %cst_15 = arith.constant 0.000000e+00 : f32
      %52 = vector.broadcast %cst_15 : f32 to vector<4x8x128xf32>
      %c0_16 = arith.constant 0 : index
      %c0_17 = arith.constant 0 : index
      %c0_18 = arith.constant 0 : index
      %c0_19 = arith.constant 0 : index
      %53 = vector.load %arg5[%c0_16, %c0_17, %c0_18, %c0_19] : memref<1x4x8x128xf32, #tpu.memory_space<vmem>>, vector<1x4x8x128xf32>
      %54 = vector.shape_cast %53 : vector<1x4x8x128xf32> to vector<4x8x128xf32>
      %55 = vector.shape_cast %52 : vector<4x8x128xf32> to vector<1x4x8x128xf32>
      tpu.vector_store %arg5[%c0_16, %c0_17, %c0_18, %c0_19], %55 {strides = array<i32>} : memref<1x4x8x128xf32, #tpu.memory_space<vmem>>, vector<1x4x8x128xf32>,
    } else {
    }
    %c0 = arith.constant 0 : index
    %c0_1 = arith.constant 0 : index
    %c0_2 = arith.constant 0 : index
    %c0_3 = arith.constant 0 : index
    %3 = vector.load %arg2[%c0, %c0_1, %c0_2, %c0_3] : memref<1x4x8x128xf32, #tpu.memory_space<vmem>>, vector<1x4x8x128xf32>
    %4 = vector.shape_cast %3 : vector<1x4x8x128xf32> to vector<4x8x128xf32>
    %c0_4 = arith.constant 0 : index
    %c0_5 = arith.constant 0 : index
    %c0_6 = arith.constant 0 : index
    %c0_7 = arith.constant 0 : index
    %5 = vector.load %arg3[%c0_4, %c0_5, %c0_6, %c0_7] : memref<1x4x8x128xf32, #tpu.memory_space<vmem>>, vector<1x4x8x128xf32>
    %6 = vector.shape_cast %5 : vector<1x4x8x128xf32> to vector<4x8x128xf32>
    %7 = vector.extract_strided_slice %4 {offsets = [0, 0, 0], sizes = [1, 8, 128], strides = [1, 1, 1]} : vector<4x8x128xf32> to vector<1x8x128xf32>
    %8 = vector.shape_cast %7 : vector<1x8x128xf32> to vector<8x128xf32>
    %9 = vector.extract_strided_slice %4 {offsets = [1, 0, 0], sizes = [1, 8, 128], strides = [1, 1, 1]} : vector<4x8x128xf32> to vector<1x8x128xf32>
    %10 = vector.shape_cast %9 : vector<1x8x128xf32> to vector<8x128xf32>
    %11 = arith.maximumf %8, %10 : vector<8x128xf32>
    %12 = vector.extract_strided_slice %4 {offsets = [2, 0, 0], sizes = [1, 8, 128], strides = [1, 1, 1]} : vector<4x8x128xf32> to vector<1x8x128xf32>
    %13 = vector.shape_cast %12 : vector<1x8x128xf32> to vector<8x128xf32>
    %14 = arith.maximumf %11, %13 : vector<8x128xf32>
    %15 = vector.extract_strided_slice %4 {offsets = [3, 0, 0], sizes = [1, 8, 128], strides = [1, 1, 1]} : vector<4x8x128xf32> to vector<1x8x128xf32>
    %16 = vector.shape_cast %15 : vector<1x8x128xf32> to vector<8x128xf32>
    %17 = arith.maximumf %14, %16 : vector<8x128xf32>
    %18 = vector.extract_strided_slice %4 {offsets = [0, 0, 0], sizes = [1, 8, 128], strides = [1, 1, 1]} : vector<4x8x128xf32> to vector<1x8x128xf32>
    %19 = vector.shape_cast %18 : vector<1x8x128xf32> to vector<8x128xf32>
    %20 = arith.subf %19, %17 : vector<8x128xf32>
    %21 = math.exp %20 : vector<8x128xf32>
    %22 = vector.extract_strided_slice %4 {offsets = [1, 0, 0], sizes = [1, 8, 128], strides = [1, 1, 1]} : vector<4x8x128xf32> to vector<1x8x128xf32>
    %23 = vector.shape_cast %22 : vector<1x8x128xf32> to vector<8x128xf32>
    %24 = arith.subf %23, %17 : vector<8x128xf32>
    %25 = math.exp %24 : vector<8x128xf32>
    %26 = vector.extract_strided_slice %4 {offsets = [2, 0, 0], sizes = [1, 8, 128], strides = [1, 1, 1]} : vector<4x8x128xf32> to vector<1x8x128xf32>
    %27 = vector.shape_cast %26 : vector<1x8x128xf32> to vector<8x128xf32>
    %28 = arith.subf %27, %17 : vector<8x128xf32>
    %29 = math.exp %28 : vector<8x128xf32>
    %30 = vector.extract_strided_slice %4 {offsets = [3, 0, 0], sizes = [1, 8, 128], strides = [1, 1, 1]} : vector<4x8x128xf32> to vector<1x8x128xf32>
    %31 = vector.shape_cast %30 : vector<1x8x128xf32> to vector<8x128xf32>
    %32 = arith.subf %31, %17 : vector<8x128xf32>
    %33 = math.exp %32 : vector<8x128xf32>
    %34 = arith.addf %21, %25 : vector<8x128xf32>
    %35 = arith.addf %34, %29 : vector<8x128xf32>
    %36 = arith.addf %35, %33 : vector<8x128xf32>
    %37 = tpu.reciprocal %36 : vector<8x128xf32> -> vector<8x128xf32>
    %38 = arith.mulf %21, %37 : vector<8x128xf32>
    %39 = arith.mulf %25, %37 : vector<8x128xf32>
    %40 = arith.mulf %29, %37 : vector<8x128xf32>
    %41 = arith.mulf %33, %37 : vector<8x128xf32>
    %c0_i32_8 = arith.constant 0 : i32
    %42 = arith.cmpi eq, %arg1, %c0_i32_8 : i32
    %true = arith.constant true
    %43 = arith.xori %42, %true : i1
    %44 = arith.extui %43 : i1 to i32
    %c0_i32_9 = arith.constant 0 : i32
    %45 = arith.cmpi ne, %44, %c0_i32_9 : i32
    scf.if %45 {
      %48 = vector.extract_strided_slice %6 {offsets = [0, 0, 0], sizes = [1, 8, 128], strides = [1, 1, 1]} : vector<4x8x128xf32> to vector<1x8x128xf32>
      %49 = vector.shape_cast %48 : vector<1x8x128xf32> to vector<8x128xf32>
      %50 = arith.mulf %38, %49 : vector<8x128xf32>
      %51 = arith.addf %38, %49 : vector<8x128xf32>
      %c0_11 = arith.constant 0 : index
      %c0_12 = arith.constant 0 : index
      %c0_13 = arith.constant 0 : index
      %c0_14 = arith.constant 0 : index
      %52 = vector.load %arg4[%c0_11, %c0_12, %c0_13, %c0_14] : memref<1x4x8x128xf32, #tpu.memory_space<vmem>>, vector<1x1x8x128xf32>
      %53 = vector.shape_cast %52 : vector<1x1x8x128xf32> to vector<8x128xf32>
      %54 = arith.addf %53, %50 : vector<8x128xf32>
      %c0_15 = arith.constant 0 : index
      %c0_16 = arith.constant 0 : index
      %c0_17 = arith.constant 0 : index
      %c0_18 = arith.constant 0 : index
      %55 = vector.load %arg4[%c0_15, %c0_16, %c0_17, %c0_18] : memref<1x4x8x128xf32, #tpu.memory_space<vmem>>, vector<1x1x8x128xf32>
      %56 = vector.shape_cast %55 : vector<1x1x8x128xf32> to vector<8x128xf32>
      %57 = vector.shape_cast %54 : vector<8x128xf32> to vector<1x1x8x128xf32>
      tpu.vector_store %arg4[%c0_15, %c0_16, %c0_17, %c0_18], %57 {strides = array<i32>} : memref<1x4x8x128xf32, #tpu.memory_space<vmem>>, vector<1x1x8x128xf32>,
      %c0_19 = arith.constant 0 : index
      %c0_20 = arith.constant 0 : index
      %c0_21 = arith.constant 0 : index
      %c0_22 = arith.constant 0 : index
      %58 = vector.load %arg5[%c0_19, %c0_20, %c0_21, %c0_22] : memref<1x4x8x128xf32, #tpu.memory_space<vmem>>, vector<1x1x8x128xf32>
      %59 = vector.shape_cast %58 : vector<1x1x8x128xf32> to vector<8x128xf32>
      %60 = arith.addf %59, %51 : vector<8x128xf32>
      %c0_23 = arith.constant 0 : index
      %c0_24 = arith.constant 0 : index
      %c0_25 = arith.constant 0 : index
      %c0_26 = arith.constant 0 : index
      %61 = vector.load %arg5[%c0_23, %c0_24, %c0_25, %c0_26] : memref<1x4x8x128xf32, #tpu.memory_space<vmem>>, vector<1x1x8x128xf32>
      %62 = vector.shape_cast %61 : vector<1x1x8x128xf32> to vector<8x128xf32>
      %63 = vector.shape_cast %60 : vector<8x128xf32> to vector<1x1x8x128xf32>
      tpu.vector_store %arg5[%c0_23, %c0_24, %c0_25, %c0_26], %63 {strides = array<i32>} : memref<1x4x8x128xf32, #tpu.memory_space<vmem>>, vector<1x1x8x128xf32>,
      %64 = vector.extract_strided_slice %6 {offsets = [1, 0, 0], sizes = [1, 8, 128], strides = [1, 1, 1]} : vector<4x8x128xf32> to vector<1x8x128xf32>
      %65 = vector.shape_cast %64 : vector<1x8x128xf32> to vector<8x128xf32>
      %66 = arith.mulf %39, %65 : vector<8x128xf32>
      %67 = arith.addf %39, %65 : vector<8x128xf32>
      %c0_27 = arith.constant 0 : index
      %c1 = arith.constant 1 : index
      %c0_28 = arith.constant 0 : index
      %c0_29 = arith.constant 0 : index
      %68 = vector.load %arg4[%c0_27, %c1, %c0_28, %c0_29] : memref<1x4x8x128xf32, #tpu.memory_space<vmem>>, vector<1x1x8x128xf32>
      %69 = vector.shape_cast %68 : vector<1x1x8x128xf32> to vector<8x128xf32>
      %70 = arith.addf %69, %66 : vector<8x128xf32>
      %c0_30 = arith.constant 0 : index
      %c1_31 = arith.constant 1 : index
      %c0_32 = arith.constant 0 : index
      %c0_33 = arith.constant 0 : index
      %71 = vector.load %arg4[%c0_30, %c1_31, %c0_32, %c0_33] : memref<1x4x8x128xf32, #tpu.memory_space<vmem>>, vector<1x1x8x128xf32>
      %72 = vector.shape_cast %71 : vector<1x1x8x128xf32> to vector<8x128xf32>
      %73 = vector.shape_cast %70 : vector<8x128xf32> to vector<1x1x8x128xf32>
      tpu.vector_store %arg4[%c0_30, %c1_31, %c0_32, %c0_33], %73 {strides = array<i32>} : memref<1x4x8x128xf32, #tpu.memory_space<vmem>>, vector<1x1x8x128xf32>,
      %c0_34 = arith.constant 0 : index
      %c1_35 = arith.constant 1 : index
      %c0_36 = arith.constant 0 : index
      %c0_37 = arith.constant 0 : index
      %74 = vector.load %arg5[%c0_34, %c1_35, %c0_36, %c0_37] : memref<1x4x8x128xf32, #tpu.memory_space<vmem>>, vector<1x1x8x128xf32>
      %75 = vector.shape_cast %74 : vector<1x1x8x128xf32> to vector<8x128xf32>
      %76 = arith.addf %75, %67 : vector<8x128xf32>
      %c0_38 = arith.constant 0 : index
      %c1_39 = arith.constant 1 : index
      %c0_40 = arith.constant 0 : index
      %c0_41 = arith.constant 0 : index
      %77 = vector.load %arg5[%c0_38, %c1_39, %c0_40, %c0_41] : memref<1x4x8x128xf32, #tpu.memory_space<vmem>>, vector<1x1x8x128xf32>
      %78 = vector.shape_cast %77 : vector<1x1x8x128xf32> to vector<8x128xf32>
      %79 = vector.shape_cast %76 : vector<8x128xf32> to vector<1x1x8x128xf32>
      tpu.vector_store %arg5[%c0_38, %c1_39, %c0_40, %c0_41], %79 {strides = array<i32>} : memref<1x4x8x128xf32, #tpu.memory_space<vmem>>, vector<1x1x8x128xf32>,
      %80 = vector.extract_strided_slice %6 {offsets = [2, 0, 0], sizes = [1, 8, 128], strides = [1, 1, 1]} : vector<4x8x128xf32> to vector<1x8x128xf32>
      %81 = vector.shape_cast %80 : vector<1x8x128xf32> to vector<8x128xf32>
      %82 = arith.mulf %40, %81 : vector<8x128xf32>
      %83 = arith.addf %40, %81 : vector<8x128xf32>
      %c0_42 = arith.constant 0 : index
      %c2 = arith.constant 2 : index
      %c0_43 = arith.constant 0 : index
      %c0_44 = arith.constant 0 : index
      %84 = vector.load %arg4[%c0_42, %c2, %c0_43, %c0_44] : memref<1x4x8x128xf32, #tpu.memory_space<vmem>>, vector<1x1x8x128xf32>
      %85 = vector.shape_cast %84 : vector<1x1x8x128xf32> to vector<8x128xf32>
      %86 = arith.addf %85, %82 : vector<8x128xf32>
      %c0_45 = arith.constant 0 : index
      %c2_46 = arith.constant 2 : index
      %c0_47 = arith.constant 0 : index
      %c0_48 = arith.constant 0 : index
      %87 = vector.load %arg4[%c0_45, %c2_46, %c0_47, %c0_48] : memref<1x4x8x128xf32, #tpu.memory_space<vmem>>, vector<1x1x8x128xf32>
      %88 = vector.shape_cast %87 : vector<1x1x8x128xf32> to vector<8x128xf32>
      %89 = vector.shape_cast %86 : vector<8x128xf32> to vector<1x1x8x128xf32>
      tpu.vector_store %arg4[%c0_45, %c2_46, %c0_47, %c0_48], %89 {strides = array<i32>} : memref<1x4x8x128xf32, #tpu.memory_space<vmem>>, vector<1x1x8x128xf32>,
      %c0_49 = arith.constant 0 : index
      %c2_50 = arith.constant 2 : index
      %c0_51 = arith.constant 0 : index
      %c0_52 = arith.constant 0 : index
      %90 = vector.load %arg5[%c0_49, %c2_50, %c0_51, %c0_52] : memref<1x4x8x128xf32, #tpu.memory_space<vmem>>, vector<1x1x8x128xf32>
      %91 = vector.shape_cast %90 : vector<1x1x8x128xf32> to vector<8x128xf32>
      %92 = arith.addf %91, %83 : vector<8x128xf32>
      %c0_53 = arith.constant 0 : index
      %c2_54 = arith.constant 2 : index
      %c0_55 = arith.constant 0 : index
      %c0_56 = arith.constant 0 : index
      %93 = vector.load %arg5[%c0_53, %c2_54, %c0_55, %c0_56] : memref<1x4x8x128xf32, #tpu.memory_space<vmem>>, vector<1x1x8x128xf32>
      %94 = vector.shape_cast %93 : vector<1x1x8x128xf32> to vector<8x128xf32>
      %95 = vector.shape_cast %92 : vector<8x128xf32> to vector<1x1x8x128xf32>
      tpu.vector_store %arg5[%c0_53, %c2_54, %c0_55, %c0_56], %95 {strides = array<i32>} : memref<1x4x8x128xf32, #tpu.memory_space<vmem>>, vector<1x1x8x128xf32>,
      %96 = vector.extract_strided_slice %6 {offsets = [3, 0, 0], sizes = [1, 8, 128], strides = [1, 1, 1]} : vector<4x8x128xf32> to vector<1x8x128xf32>
      %97 = vector.shape_cast %96 : vector<1x8x128xf32> to vector<8x128xf32>
      %98 = arith.mulf %41, %97 : vector<8x128xf32>
      %99 = arith.addf %41, %97 : vector<8x128xf32>
      %c0_57 = arith.constant 0 : index
      %c3 = arith.constant 3 : index
      %c0_58 = arith.constant 0 : index
      %c0_59 = arith.constant 0 : index
      %100 = vector.load %arg4[%c0_57, %c3, %c0_58, %c0_59] : memref<1x4x8x128xf32, #tpu.memory_space<vmem>>, vector<1x1x8x128xf32>
      %101 = vector.shape_cast %100 : vector<1x1x8x128xf32> to vector<8x128xf32>
      %102 = arith.addf %101, %98 : vector<8x128xf32>
      %c0_60 = arith.constant 0 : index
      %c3_61 = arith.constant 3 : index
      %c0_62 = arith.constant 0 : index
      %c0_63 = arith.constant 0 : index
      %103 = vector.load %arg4[%c0_60, %c3_61, %c0_62, %c0_63] : memref<1x4x8x128xf32, #tpu.memory_space<vmem>>, vector<1x1x8x128xf32>
      %104 = vector.shape_cast %103 : vector<1x1x8x128xf32> to vector<8x128xf32>
      %105 = vector.shape_cast %102 : vector<8x128xf32> to vector<1x1x8x128xf32>
      tpu.vector_store %arg4[%c0_60, %c3_61, %c0_62, %c0_63], %105 {strides = array<i32>} : memref<1x4x8x128xf32, #tpu.memory_space<vmem>>, vector<1x1x8x128xf32>,
      %c0_64 = arith.constant 0 : index
      %c3_65 = arith.constant 3 : index
      %c0_66 = arith.constant 0 : index
      %c0_67 = arith.constant 0 : index
      %106 = vector.load %arg5[%c0_64, %c3_65, %c0_66, %c0_67] : memref<1x4x8x128xf32, #tpu.memory_space<vmem>>, vector<1x1x8x128xf32>
      %107 = vector.shape_cast %106 : vector<1x1x8x128xf32> to vector<8x128xf32>
      %108 = arith.addf %107, %99 : vector<8x128xf32>
      %c0_68 = arith.constant 0 : index
      %c3_69 = arith.constant 3 : index
      %c0_70 = arith.constant 0 : index
      %c0_71 = arith.constant 0 : index
      %109 = vector.load %arg5[%c0_68, %c3_69, %c0_70, %c0_71] : memref<1x4x8x128xf32, #tpu.memory_space<vmem>>, vector<1x1x8x128xf32>
      %110 = vector.shape_cast %109 : vector<1x1x8x128xf32> to vector<8x128xf32>
      %111 = vector.shape_cast %108 : vector<8x128xf32> to vector<1x1x8x128xf32>
      tpu.vector_store %arg5[%c0_68, %c3_69, %c0_70, %c0_71], %111 {strides = array<i32>} : memref<1x4x8x128xf32, #tpu.memory_space<vmem>>, vector<1x1x8x128xf32>,
    } else {
    }
    %46 = arith.extui %42 : i1 to i32
    %c0_i32_10 = arith.constant 0 : i32
    %47 = arith.cmpi ne, %46, %c0_i32_10 : i32
    scf.if %47 {
      %48 = tpu.iota {dimensions = array<i32: 0>} : vector<8x128xi32>
      %49 = tpu.iota {dimensions = array<i32: 1>} : vector<8x128xi32>
      %c8_i32 = arith.constant 8 : i32
      %50 = arith.muli %arg1, %c8_i32 : i32
      %51 = vector.broadcast %50 : i32 to vector<8x128xi32>
      %52 = arith.addi %51, %48 : vector<8x128xi32>
      %c128_i32 = arith.constant 128 : i32
      %53 = vector.broadcast %c128_i32 : i32 to vector<8x128xi32>
      %54 = arith.muli %52, %53 : vector<8x128xi32>
      %55 = arith.addi %54, %49 : vector<8x128xi32>
      %c256_i32 = arith.constant 256 : i32
      %56 = vector.broadcast %c256_i32 : i32 to vector<8x128xi32>
      %57 = arith.cmpi slt, %55, %56 : vector<8x128xi32>
      %58 = vector.extract_strided_slice %6 {offsets = [0, 0, 0], sizes = [1, 8, 128], strides = [1, 1, 1]} : vector<4x8x128xf32> to vector<1x8x128xf32>
      %59 = vector.shape_cast %58 : vector<1x8x128xf32> to vector<8x128xf32>
      %60 = arith.mulf %38, %59 : vector<8x128xf32>
      %61 = arith.addf %38, %59 : vector<8x128xf32>
      %cst = arith.constant 0.000000e+00 : f32
      %62 = vector.broadcast %cst : f32 to vector<8x128xf32>
      %63 = arith.select %57, %61, %62 : vector<8x128xi1>, vector<8x128xf32>
      %c0_11 = arith.constant 0 : index
      %c0_12 = arith.constant 0 : index
      %c0_13 = arith.constant 0 : index
      %c0_14 = arith.constant 0 : index
      %64 = vector.load %arg4[%c0_11, %c0_12, %c0_13, %c0_14] : memref<1x4x8x128xf32, #tpu.memory_space<vmem>>, vector<1x1x8x128xf32>
      %65 = vector.shape_cast %64 : vector<1x1x8x128xf32> to vector<8x128xf32>
      %66 = arith.addf %65, %60 : vector<8x128xf32>
      %c0_15 = arith.constant 0 : index
      %c0_16 = arith.constant 0 : index
      %c0_17 = arith.constant 0 : index
      %c0_18 = arith.constant 0 : index
      %67 = vector.load %arg4[%c0_15, %c0_16, %c0_17, %c0_18] : memref<1x4x8x128xf32, #tpu.memory_space<vmem>>, vector<1x1x8x128xf32>
      %68 = vector.shape_cast %67 : vector<1x1x8x128xf32> to vector<8x128xf32>
      %69 = vector.shape_cast %66 : vector<8x128xf32> to vector<1x1x8x128xf32>
      tpu.vector_store %arg4[%c0_15, %c0_16, %c0_17, %c0_18], %69 {strides = array<i32>} : memref<1x4x8x128xf32, #tpu.memory_space<vmem>>, vector<1x1x8x128xf32>,
      %c0_19 = arith.constant 0 : index
      %c0_20 = arith.constant 0 : index
      %c0_21 = arith.constant 0 : index
      %c0_22 = arith.constant 0 : index
      %70 = vector.load %arg5[%c0_19, %c0_20, %c0_21, %c0_22] : memref<1x4x8x128xf32, #tpu.memory_space<vmem>>, vector<1x1x8x128xf32>
      %71 = vector.shape_cast %70 : vector<1x1x8x128xf32> to vector<8x128xf32>
      %72 = arith.addf %71, %63 : vector<8x128xf32>
      %c0_23 = arith.constant 0 : index
      %c0_24 = arith.constant 0 : index
      %c0_25 = arith.constant 0 : index
      %c0_26 = arith.constant 0 : index
      %73 = vector.load %arg5[%c0_23, %c0_24, %c0_25, %c0_26] : memref<1x4x8x128xf32, #tpu.memory_space<vmem>>, vector<1x1x8x128xf32>
      %74 = vector.shape_cast %73 : vector<1x1x8x128xf32> to vector<8x128xf32>
      %75 = vector.shape_cast %72 : vector<8x128xf32> to vector<1x1x8x128xf32>
      tpu.vector_store %arg5[%c0_23, %c0_24, %c0_25, %c0_26], %75 {strides = array<i32>} : memref<1x4x8x128xf32, #tpu.memory_space<vmem>>, vector<1x1x8x128xf32>,
      %76 = vector.extract_strided_slice %6 {offsets = [1, 0, 0], sizes = [1, 8, 128], strides = [1, 1, 1]} : vector<4x8x128xf32> to vector<1x8x128xf32>
      %77 = vector.shape_cast %76 : vector<1x8x128xf32> to vector<8x128xf32>
      %78 = arith.mulf %39, %77 : vector<8x128xf32>
      %79 = arith.addf %39, %77 : vector<8x128xf32>
      %cst_27 = arith.constant 0.000000e+00 : f32
      %80 = vector.broadcast %cst_27 : f32 to vector<8x128xf32>
      %81 = arith.select %57, %79, %80 : vector<8x128xi1>, vector<8x128xf32>
      %c0_28 = arith.constant 0 : index
      %c1 = arith.constant 1 : index
      %c0_29 = arith.constant 0 : index
      %c0_30 = arith.constant 0 : index
      %82 = vector.load %arg4[%c0_28, %c1, %c0_29, %c0_30] : memref<1x4x8x128xf32, #tpu.memory_space<vmem>>, vector<1x1x8x128xf32>
      %83 = vector.shape_cast %82 : vector<1x1x8x128xf32> to vector<8x128xf32>
      %84 = arith.addf %83, %78 : vector<8x128xf32>
      %c0_31 = arith.constant 0 : index
      %c1_32 = arith.constant 1 : index
      %c0_33 = arith.constant 0 : index
      %c0_34 = arith.constant 0 : index
      %85 = vector.load %arg4[%c0_31, %c1_32, %c0_33, %c0_34] : memref<1x4x8x128xf32, #tpu.memory_space<vmem>>, vector<1x1x8x128xf32>
      %86 = vector.shape_cast %85 : vector<1x1x8x128xf32> to vector<8x128xf32>
      %87 = vector.shape_cast %84 : vector<8x128xf32> to vector<1x1x8x128xf32>
      tpu.vector_store %arg4[%c0_31, %c1_32, %c0_33, %c0_34], %87 {strides = array<i32>} : memref<1x4x8x128xf32, #tpu.memory_space<vmem>>, vector<1x1x8x128xf32>,
      %c0_35 = arith.constant 0 : index
      %c1_36 = arith.constant 1 : index
      %c0_37 = arith.constant 0 : index
      %c0_38 = arith.constant 0 : index
      %88 = vector.load %arg5[%c0_35, %c1_36, %c0_37, %c0_38] : memref<1x4x8x128xf32, #tpu.memory_space<vmem>>, vector<1x1x8x128xf32>
      %89 = vector.shape_cast %88 : vector<1x1x8x128xf32> to vector<8x128xf32>
      %90 = arith.addf %89, %81 : vector<8x128xf32>
      %c0_39 = arith.constant 0 : index
      %c1_40 = arith.constant 1 : index
      %c0_41 = arith.constant 0 : index
      %c0_42 = arith.constant 0 : index
      %91 = vector.load %arg5[%c0_39, %c1_40, %c0_41, %c0_42] : memref<1x4x8x128xf32, #tpu.memory_space<vmem>>, vector<1x1x8x128xf32>
      %92 = vector.shape_cast %91 : vector<1x1x8x128xf32> to vector<8x128xf32>
      %93 = vector.shape_cast %90 : vector<8x128xf32> to vector<1x1x8x128xf32>
      tpu.vector_store %arg5[%c0_39, %c1_40, %c0_41, %c0_42], %93 {strides = array<i32>} : memref<1x4x8x128xf32, #tpu.memory_space<vmem>>, vector<1x1x8x128xf32>,
      %94 = vector.extract_strided_slice %6 {offsets = [2, 0, 0], sizes = [1, 8, 128], strides = [1, 1, 1]} : vector<4x8x128xf32> to vector<1x8x128xf32>
      %95 = vector.shape_cast %94 : vector<1x8x128xf32> to vector<8x128xf32>
      %96 = arith.mulf %40, %95 : vector<8x128xf32>
      %97 = arith.addf %40, %95 : vector<8x128xf32>
      %cst_43 = arith.constant 0.000000e+00 : f32
      %98 = vector.broadcast %cst_43 : f32 to vector<8x128xf32>
      %99 = arith.select %57, %97, %98 : vector<8x128xi1>, vector<8x128xf32>
      %c0_44 = arith.constant 0 : index
      %c2 = arith.constant 2 : index
      %c0_45 = arith.constant 0 : index
      %c0_46 = arith.constant 0 : index
      %100 = vector.load %arg4[%c0_44, %c2, %c0_45, %c0_46] : memref<1x4x8x128xf32, #tpu.memory_space<vmem>>, vector<1x1x8x128xf32>
      %101 = vector.shape_cast %100 : vector<1x1x8x128xf32> to vector<8x128xf32>
      %102 = arith.addf %101, %96 : vector<8x128xf32>
      %c0_47 = arith.constant 0 : index
      %c2_48 = arith.constant 2 : index
      %c0_49 = arith.constant 0 : index
      %c0_50 = arith.constant 0 : index
      %103 = vector.load %arg4[%c0_47, %c2_48, %c0_49, %c0_50] : memref<1x4x8x128xf32, #tpu.memory_space<vmem>>, vector<1x1x8x128xf32>
      %104 = vector.shape_cast %103 : vector<1x1x8x128xf32> to vector<8x128xf32>
      %105 = vector.shape_cast %102 : vector<8x128xf32> to vector<1x1x8x128xf32>
      tpu.vector_store %arg4[%c0_47, %c2_48, %c0_49, %c0_50], %105 {strides = array<i32>} : memref<1x4x8x128xf32, #tpu.memory_space<vmem>>, vector<1x1x8x128xf32>,
      %c0_51 = arith.constant 0 : index
      %c2_52 = arith.constant 2 : index
      %c0_53 = arith.constant 0 : index
      %c0_54 = arith.constant 0 : index
      %106 = vector.load %arg5[%c0_51, %c2_52, %c0_53, %c0_54] : memref<1x4x8x128xf32, #tpu.memory_space<vmem>>, vector<1x1x8x128xf32>
      %107 = vector.shape_cast %106 : vector<1x1x8x128xf32> to vector<8x128xf32>
      %108 = arith.addf %107, %99 : vector<8x128xf32>
      %c0_55 = arith.constant 0 : index
      %c2_56 = arith.constant 2 : index
      %c0_57 = arith.constant 0 : index
      %c0_58 = arith.constant 0 : index
      %109 = vector.load %arg5[%c0_55, %c2_56, %c0_57, %c0_58] : memref<1x4x8x128xf32, #tpu.memory_space<vmem>>, vector<1x1x8x128xf32>
      %110 = vector.shape_cast %109 : vector<1x1x8x128xf32> to vector<8x128xf32>
      %111 = vector.shape_cast %108 : vector<8x128xf32> to vector<1x1x8x128xf32>
      tpu.vector_store %arg5[%c0_55, %c2_56, %c0_57, %c0_58], %111 {strides = array<i32>} : memref<1x4x8x128xf32, #tpu.memory_space<vmem>>, vector<1x1x8x128xf32>,
      %112 = vector.extract_strided_slice %6 {offsets = [3, 0, 0], sizes = [1, 8, 128], strides = [1, 1, 1]} : vector<4x8x128xf32> to vector<1x8x128xf32>
      %113 = vector.shape_cast %112 : vector<1x8x128xf32> to vector<8x128xf32>
      %114 = arith.mulf %41, %113 : vector<8x128xf32>
      %115 = arith.addf %41, %113 : vector<8x128xf32>
      %cst_59 = arith.constant 0.000000e+00 : f32
      %116 = vector.broadcast %cst_59 : f32 to vector<8x128xf32>
      %117 = arith.select %57, %115, %116 : vector<8x128xi1>, vector<8x128xf32>
      %c0_60 = arith.constant 0 : index
      %c3 = arith.constant 3 : index
      %c0_61 = arith.constant 0 : index
      %c0_62 = arith.constant 0 : index
      %118 = vector.load %arg4[%c0_60, %c3, %c0_61, %c0_62] : memref<1x4x8x128xf32, #tpu.memory_space<vmem>>, vector<1x1x8x128xf32>
      %119 = vector.shape_cast %118 : vector<1x1x8x128xf32> to vector<8x128xf32>
      %120 = arith.addf %119, %114 : vector<8x128xf32>
      %c0_63 = arith.constant 0 : index
      %c3_64 = arith.constant 3 : index
      %c0_65 = arith.constant 0 : index
      %c0_66 = arith.constant 0 : index
      %121 = vector.load %arg4[%c0_63, %c3_64, %c0_65, %c0_66] : memref<1x4x8x128xf32, #tpu.memory_space<vmem>>, vector<1x1x8x128xf32>
      %122 = vector.shape_cast %121 : vector<1x1x8x128xf32> to vector<8x128xf32>
      %123 = vector.shape_cast %120 : vector<8x128xf32> to vector<1x1x8x128xf32>
      tpu.vector_store %arg4[%c0_63, %c3_64, %c0_65, %c0_66], %123 {strides = array<i32>} : memref<1x4x8x128xf32, #tpu.memory_space<vmem>>, vector<1x1x8x128xf32>,
      %c0_67 = arith.constant 0 : index
      %c3_68 = arith.constant 3 : index
      %c0_69 = arith.constant 0 : index
      %c0_70 = arith.constant 0 : index
      %124 = vector.load %arg5[%c0_67, %c3_68, %c0_69, %c0_70] : memref<1x4x8x128xf32, #tpu.memory_space<vmem>>, vector<1x1x8x128xf32>
      %125 = vector.shape_cast %124 : vector<1x1x8x128xf32> to vector<8x128xf32>
      %126 = arith.addf %125, %117 : vector<8x128xf32>
      %c0_71 = arith.constant 0 : index
      %c3_72 = arith.constant 3 : index
      %c0_73 = arith.constant 0 : index
      %c0_74 = arith.constant 0 : index
      %127 = vector.load %arg5[%c0_71, %c3_72, %c0_73, %c0_74] : memref<1x4x8x128xf32, #tpu.memory_space<vmem>>, vector<1x1x8x128xf32>
      %128 = vector.shape_cast %127 : vector<1x1x8x128xf32> to vector<8x128xf32>
      %129 = vector.shape_cast %126 : vector<8x128xf32> to vector<1x1x8x128xf32>
      tpu.vector_store %arg5[%c0_71, %c3_72, %c0_73, %c0_74], %129 {strides = array<i32>} : memref<1x4x8x128xf32, #tpu.memory_space<vmem>>, vector<1x1x8x128xf32>,
    } else {
    }
    return
  }
  func.func @transform_0(%arg0: i32, %arg1: i32) -> (i32, i32, i32, i32) {
    %c0_i32 = arith.constant 0 : i32
    %c0_i32_0 = arith.constant 0 : i32
    %c0_i32_1 = arith.constant 0 : i32
    return %arg0, %c0_i32, %arg1, %c0_i32_0 : i32, i32, i32, i32
  }
  func.func @transform_1(%arg0: i32, %arg1: i32) -> (i32, i32, i32, i32) {
    %c0_i32 = arith.constant 0 : i32
    %c0_i32_0 = arith.constant 0 : i32
    %c0_i32_1 = arith.constant 0 : i32
    return %arg0, %c0_i32, %arg1, %c0_i32_0 : i32, i32, i32, i32
  }
  func.func @transform_2(%arg0: i32, %arg1: i32) -> (i32, i32, i32, i32) {
    %c0_i32 = arith.constant 0 : i32
    %c0_i32_0 = arith.constant 0 : i32
    %c0_i32_1 = arith.constant 0 : i32
    %c0_i32_2 = arith.constant 0 : i32
    return %arg0, %c0_i32, %c0_i32_0, %c0_i32_1 : i32, i32, i32, i32
  }
  func.func @transform_3(%arg0: i32, %arg1: i32) -> (i32, i32, i32, i32) {
    %c0_i32 = arith.constant 0 : i32
    %c0_i32_0 = arith.constant 0 : i32
    %c0_i32_1 = arith.constant 0 : i32
    %c0_i32_2 = arith.constant 0 : i32
    return %arg0, %c0_i32, %c0_i32_0, %c0_i32_1 : i32, i32, i32, i32
  }
}

</mosaic_0001>

<llo_original>
// kernel: dice_loss.1
$region0: #{dice_loss.1}
  #allocation0 [shape = 'u32[]', space=smem, size = 0x4, offset = 0x4, fixed_abs, tag = 'smem constant byte address 0x4 - core index']
  #allocation1 [shape = 'u32[144,128]{1,0:T(1,128)}', space=vmem, size = 0x12000, scoped, tag = 'internal scratch']
  %s0 = inlined_call_operand.vmem [shape: f32[2,4,8,128], index: 0, kind: input, shape index: {}]
  %s1 = inlined_call_operand.vmem [shape: f32[2,4,8,128], index: 1, kind: input, shape index: {}]
  %s2 = inlined_call_operand.vmem [shape: f32[2,4,8,128], index: 2, kind: output, shape index: {0}]
  %s3 = inlined_call_operand.vmem [shape: f32[2,4,8,128], index: 3, kind: output, shape index: {1}]
  %4 = xla_tuple %s2, %s3
  %s5 = sld [smem:[#allocation0]]
  $region61: #{dice_loss.1} parent=0
    _
  %s7 = ssub.s32 1, %s5
  %s8 = scalar_select 0, %s7, %s5
  loop: start=0, step=1, limit=4
  $region2: #{dice_loss.1} parent=0 // loop_pre_header
    _
  $region3: #{dice_loss.1} parent=0 // loop_header
    %s10 = sphi 0, %s14
    %p11 = scmp.ge.s32.totalorder %s10, 4
    %s17 = sphi 0, %s29
    %s18 = sphi 0, %s25
    %s19 = sphi 0, %s17
    %s20 = sphi 0, %s18
    %s21 = sphi 0, %s19
    %s22 = sphi 0, %s20
    %s34 = sphi 0, %s36
    %s37 = sphi 0, %s34
    %s38 = sphi 0, %s37
    %s54 = sphi 0, %s38
    %s62 = sphi 0, %s64
    %s65 = sphi 0, %s62
    %s66 = sphi 0, %s65
    %s82 = sphi 0, %s66
    %s88 = sphi 0, %s90
    %s91 = sphi 0, %s88
    %s92 = sphi 0, %s91
    %s108 = sphi 0, %s92
    %s114 = sphi 0, %s116
    %s117 = sphi 0, %s114
    %s118 = sphi 0, %s117
    %s134 = sphi 0, %s118
  $region4: #{dice_loss.1} parent=0 // loop_header_branch
    %13 = sbr.rel (%p11) target = $region8
  $region5: #{dice_loss.1} parent=0 // loop_body
    %s15 = ssub.s32 %s10, 1
    %s16 = ssub.s32 %s10, 2
    %s23 = sadd.s32 1, %s18
    %p24 = scmp.ge.s32.totalorder %s23, 1
    %s25 = scalar_select %p24, 0, %s23
    %s26 = sadd.s32 1, %s17
    %s27 = scalar_select %p24, %s26, %s17
    %p28 = scmp.ge.s32.totalorder %s27, 2
    %s29 = scalar_select %p28, 0, %s27
    %s30 = ssub.s32 %s17, %s29
    %s31 = ssub.s32 %s18, %s25
    %s32 = sor.u32 %s30, %s31
    %p33 = scmp.eq.s32.totalorder %s32, 0
    %s35 = sadd.s32 %s34, 1
    %s36 = scalar_select %p33, %s34, %s35
    %p39 = pneg %p33
    %p40 = scmp.eq.s32.totalorder %s10, 1
    %p41 = por %p39, %p40
    %p42 = scmp.ne.s32.totalorder %s34, %s37
    %p43 = scmp.eq.s32.totalorder %s10, 0
    %p44 = por %p42, %p43
    %p45 = scmp.ne.s32.totalorder %s34, %s37
    %p46 = scmp.eq.s32.totalorder %s15, 1
    %p47 = por %p45, %p46
    %p48 = scmp.ne.s32.totalorder %s37, %s38
    %p49 = scmp.eq.s32.totalorder %s15, 0
    %p50 = por %p48, %p49
    %p51 = scmp.ne.s32.totalorder %s37, %s38
    %p52 = scmp.eq.s32.totalorder %s16, 1
    %p53 = por %p51, %p52
    %p55 = scmp.ne.s32.totalorder %s38, %s54
    %p56 = scmp.eq.s32.totalorder %s16, 0
    %p57 = por %p55, %p56
    %s58 = ssub.s32 %s17, %s29
    %s59 = ssub.s32 %s18, %s25
    %s60 = sor.u32 %s58, %s59
    %p61 = scmp.eq.s32.totalorder %s60, 0
    %s63 = sadd.s32 %s62, 1
    %s64 = scalar_select %p61, %s62, %s63
    %p67 = pneg %p61
    %p68 = scmp.eq.s32.totalorder %s10, 1
    %p69 = por %p67, %p68
    %p70 = scmp.ne.s32.totalorder %s62, %s65
    %p71 = scmp.eq.s32.totalorder %s10, 0
    %p72 = por %p70, %p71
    %p73 = scmp.ne.s32.totalorder %s62, %s65
    %p74 = scmp.eq.s32.totalorder %s15, 1
    %p75 = por %p73, %p74
    %p76 = scmp.ne.s32.totalorder %s65, %s66
    %p77 = scmp.eq.s32.totalorder %s15, 0
    %p78 = por %p76, %p77
    %p79 = scmp.ne.s32.totalorder %s65, %s66
    %p80 = scmp.eq.s32.totalorder %s16, 1
    %p81 = por %p79, %p80
    %p83 = scmp.ne.s32.totalorder %s66, %s82
    %p84 = scmp.eq.s32.totalorder %s16, 0
    %p85 = por %p83, %p84
    %s86 = ssub.s32 %s17, %s29
    %p87 = scmp.eq.s32.totalorder %s86, 0
    %s89 = sadd.s32 %s88, 1
    %s90 = scalar_select %p87, %s88, %s89
    %p93 = pneg %p87
    %p94 = scmp.eq.s32.totalorder %s10, 1
    %p95 = por %p93, %p94
    %p96 = scmp.ne.s32.totalorder %s88, %s91
    %p97 = scmp.eq.s32.totalorder %s10, 0
    %p98 = por %p96, %p97
    %p99 = scmp.ne.s32.totalorder %s88, %s91
    %p100 = scmp.eq.s32.totalorder %s15, 1
    %p101 = por %p99, %p100
    %p102 = scmp.ne.s32.totalorder %s91, %s92
    %p103 = scmp.eq.s32.totalorder %s15, 0
    %p104 = por %p102, %p103
    %p105 = scmp.ne.s32.totalorder %s91, %s92
    %p106 = scmp.eq.s32.totalorder %s16, 1
    %p107 = por %p105, %p106
    %p109 = scmp.ne.s32.totalorder %s92, %s108
    %p110 = scmp.eq.s32.totalorder %s16, 0
    %p111 = por %p109, %p110
    %s112 = ssub.s32 %s17, %s29
    %p113 = scmp.eq.s32.totalorder %s112, 0
    %s115 = sadd.s32 %s114, 1
    %s116 = scalar_select %p113, %s114, %s115
    %p119 = pneg %p113
    %p120 = scmp.eq.s32.totalorder %s10, 1
    %p121 = por %p119, %p120
    %p122 = scmp.ne.s32.totalorder %s114, %s117
    %p123 = scmp.eq.s32.totalorder %s10, 0
    %p124 = por %p122, %p123
    %p125 = scmp.ne.s32.totalorder %s114, %s117
    %p126 = scmp.eq.s32.totalorder %s15, 1
    %p127 = por %p125, %p126
    %p128 = scmp.ne.s32.totalorder %s117, %s118
    %p129 = scmp.eq.s32.totalorder %s15, 0
    %p130 = por %p128, %p129
    %p131 = scmp.ne.s32.totalorder %s117, %s118
    %p132 = scmp.eq.s32.totalorder %s16, 1
    %p133 = por %p131, %p132
    %p135 = scmp.ne.s32.totalorder %s118, %s134
    %p136 = scmp.eq.s32.totalorder %s16, 0
    %p137 = por %p135, %p136
    %p138 = scmp.le.s32.totalorder 1, %s10
    %p139 = scmp.lt.s32.totalorder %s10, 3
    %p140 = pnand %p138, %p139
    %p141 = pneg %p140
    // Predicated region
    $region9: #{dice_loss.1} parent=5 // pred_check
      _
    $region10: #{dice_loss.1} parent=5 // pred_check_branch
      %143 = sbr.rel (%p140) target = $region12
    $region11: #{dice_loss.1} parent=5 // pred_region
      %s144 = ssub.s32 %s10, 1
    $region12: #{dice_loss.1} parent=5 // pred_fallthru
      _
    %p145 = scmp.lt.s32.totalorder %s10, 2
    // Predicated region
    $region13: #{dice_loss.1} parent=5 // pred_check
      %p146 = pneg %p145
    $region14: #{dice_loss.1} parent=5 // pred_check_branch
      %148 = sbr.rel (%p146) target = $region16
    $region15: #{dice_loss.1} parent=5 // pred_region
      // Predicated region
      $region17: #{dice_loss.1} parent=15 // pred_check
        %p149 = pneg %p44
      $region18: #{dice_loss.1} parent=15 // pred_check_branch
        %151 = sbr.rel (%p149) target = $region20
      $region19: #{dice_loss.1} parent=15 // pred_region
        %p152 = scmp.lt.s32.totalorder %s17, 1
        %s153 = scalar_select %p152, %s17, 1
        %p154 = scmp.lt.s32.totalorder %s18, 0
        %s155 = scalar_select %p154, %s18, 0
        %s156 = smul.addr %s153, 4
        %s157 = sadd.s32 %s155, %s156
        %s158 = smul.addr %s157, 8
        %s159 = scalar_lea.vmem %s0, %s158
      $region20: #{dice_loss.1} parent=15 // pred_fallthru
        _
      // Predicated region
      $region21: #{dice_loss.1} parent=15 // pred_check
        %p160 = pneg %p72
      $region22: #{dice_loss.1} parent=15 // pred_check_branch
        %162 = sbr.rel (%p160) target = $region24
      $region23: #{dice_loss.1} parent=15 // pred_region
        %p163 = scmp.lt.s32.totalorder %s17, 1
        %s164 = scalar_select %p163, %s17, 1
        %p165 = scmp.lt.s32.totalorder %s18, 0
        %s166 = scalar_select %p165, %s18, 0
        %s167 = smul.addr %s164, 4
        %s168 = sadd.s32 %s166, %s167
        %s169 = smul.addr %s168, 8
        %s170 = scalar_lea.vmem %s1, %s169
      $region24: #{dice_loss.1} parent=15 // pred_fallthru
        _
    $region16: #{dice_loss.1} parent=5 // pred_fallthru
      _
    %p171 = scmp.le.s32.totalorder 1, %s10
    %p172 = scmp.lt.s32.totalorder %s10, 3
    %p173 = pnand %p171, %p172
    %p174 = pneg %p173
    // Predicated region
    $region25: #{dice_loss.1} parent=5 // pred_check
      _
    $region26: #{dice_loss.1} parent=5 // pred_check_branch
      %176 = sbr.rel (%p173) target = $region28
    $region27: #{dice_loss.1} parent=5 // pred_region
      %s177 = ssub.s32 %s10, 1
      %p178 = scmp.lt.s32.totalorder %s19, 1
      %s179 = scalar_select %p178, %s19, 1
      %p180 = scmp.lt.s32.totalorder %s20, 0
      %s181 = scalar_select %p180, %s20, 0
      %s182 = smul.addr %s179, 4
      %s183 = sadd.s32 %s181, %s182
      %s184 = smul.addr %s183, 8
      %s185 = scalar_lea.vmem %s0, %s184
      %p186 = pneg %p50
      %p187 = pneg %p47
      %p188 = scmp.lt.s32.totalorder %s19, 1
      %s189 = scalar_select %p188, %s19, 1
      %p190 = scmp.lt.s32.totalorder %s20, 0
      %s191 = scalar_select %p190, %s20, 0
      %s192 = smul.addr %s189, 4
      %s193 = sadd.s32 %s191, %s192
      %s194 = smul.addr %s193, 8
      %s195 = scalar_lea.vmem %s1, %s194
      %p196 = pneg %p78
      %p197 = pneg %p75
      %p198 = pneg %p104
      %p199 = pneg %p101
      %p200 = scmp.lt.s32.totalorder %s19, 1
      %s201 = scalar_select %p200, %s19, 1
      %s202 = smul.addr %s201, 4
      %s203 = smul.addr %s202, 8
      %s204 = scalar_lea.vmem %s2, %s203
      %p205 = pneg %p130
      %p206 = pneg %p127
      %p207 = scmp.lt.s32.totalorder %s19, 1
      %s208 = scalar_select %p207, %s19, 1
      %s209 = smul.addr %s208, 4
      %s210 = smul.addr %s209, 8
      %s211 = scalar_lea.vmem %s3, %s210
      %p212 = scmp.lt.s32.totalorder %s19, 1
      %s213 = scalar_select %p212, %s19, 1
      %p214 = scmp.lt.s32.totalorder %s20, 0
      %s215 = scalar_select %p214, %s20, 0
      %s216 = smul.addr %s213, 4
      %s217 = sadd.s32 %s215, %s216
      %s218 = smul.addr %s217, 8
      %s219 = scalar_lea.vmem %s0, %s218
      %p220 = scmp.lt.s32.totalorder %s19, 1
      %s221 = scalar_select %p220, %s19, 1
      %p222 = scmp.lt.s32.totalorder %s20, 0
      %s223 = scalar_select %p222, %s20, 0
      %s224 = smul.addr %s221, 4
      %s225 = sadd.s32 %s223, %s224
      %s226 = smul.addr %s225, 8
      %s227 = scalar_lea.vmem %s1, %s226
      %p228 = scmp.lt.s32.totalorder %s19, 1
      %s229 = scalar_select %p228, %s19, 1
      %s230 = smul.addr %s229, 4
      %s231 = smul.addr %s230, 8
      %s232 = scalar_lea.vmem %s2, %s231
      %p233 = scmp.lt.s32.totalorder %s19, 1
      %s234 = scalar_select %p233, %s19, 1
      %s235 = smul.addr %s234, 4
      %s236 = smul.addr %s235, 8
      %s237 = scalar_lea.vmem %s3, %s236
      %p238 = scmp.eq.s32.totalorder %s20, 0
      // Predicated region
      $region29: #{dice_loss.1} parent=27 // pred_check
        %p239 = pneg %p238
      $region30: #{dice_loss.1} parent=27 // pred_check_branch
        %241 = sbr.rel (%p239) target = $region32
      $region31: #{dice_loss.1} parent=27 // pred_region
        %242 = vst [vmem:[%s232] sm:$0xff] 0.0
        %243 = vst [vmem:[%s232 + $0x8] sm:$0xff] 0.0
        %244 = vst [vmem:[%s232 + $0x10] sm:$0xff] 0.0
        %245 = vst [vmem:[%s232 + $0x18] sm:$0xff] 0.0
        %246 = vst [vmem:[%s237] sm:$0xff] 0.0
        %247 = vst [vmem:[%s237 + $0x8] sm:$0xff] 0.0
        %248 = vst [vmem:[%s237 + $0x10] sm:$0xff] 0.0
        %249 = vst [vmem:[%s237 + $0x18] sm:$0xff] 0.0
      $region32: #{dice_loss.1} parent=27 // pred_fallthru
        _
      %v250 = vld [vmem:[%s219] sm:$0xff]
      %v251 = vld [vmem:[%s219 + $0x8] sm:$0xff]
      %v252 = vld [vmem:[%s219 + $0x10] sm:$0xff]
      %v253 = vld [vmem:[%s219 + $0x18] sm:$0xff]
      %v254 = vld [vmem:[%s227] sm:$0xff]
      %v255 = vld [vmem:[%s227 + $0x8] sm:$0xff]
      %v256 = vld [vmem:[%s227 + $0x10] sm:$0xff]
      %v257 = vld [vmem:[%s227 + $0x18] sm:$0xff]
      %v258 = vmax.f32 %v250, %v251
      %v259 = vmax.f32 %v258, %v252
      %v260 = vmax.f32 %v259, %v253
      %v261 = vsub.f32 %v250, %v260
      %v262 = vmul.f32 %v261, 1.442695
      %v263 = vpow.pop %v262
      %v264 = vsub.f32 %v251, %v260
      %v265 = vmul.f32 %v264, 1.442695
      %v266 = vpow.pop %v265
      %v267 = vsub.f32 %v252, %v260
      %v268 = vmul.f32 %v267, 1.442695
      %v269 = vpow.pop %v268
      %v270 = vsub.f32 %v253, %v260
      %v271 = vmul.f32 %v270, 1.442695
      %v272 = vpow.pop %v271
      %v273 = vadd.f32 %v263, %v266
      %v274 = vadd.f32 %v273, %v269
      %v275 = vadd.f32 %v274, %v272
      %v276 = vrcp.pop %v275
      %v277 = vmul.f32 %v263, %v276
      %v278 = vmul.f32 %v266, %v276
      %v279 = vmul.f32 %v269, %v276
      %v280 = vmul.f32 %v272, %v276
      %p281 = scmp.ne.s32.totalorder %s20, 0
      // Predicated region
      $region33: #{dice_loss.1} parent=27 // pred_check
        %p282 = pneg %p281
      $region34: #{dice_loss.1} parent=27 // pred_check_branch
        %284 = sbr.rel (%p282) target = $region36
      $region35: #{dice_loss.1} parent=27 // pred_region
        %v285 = vmul.f32 %v277, %v254
        %v286 = vadd.f32 %v277, %v254
        %v287 = vld [vmem:[%s232] sm:$0xff]
        %v288 = vadd.f32 %v287, %v285
        %289 = vst [vmem:[%s232] sm:$0xff] %v288
        %v290 = vld [vmem:[%s237] sm:$0xff]
        %v291 = vadd.f32 %v290, %v286
        %292 = vst [vmem:[%s237] sm:$0xff] %v291
        %v293 = vmul.f32 %v278, %v255
        %v294 = vadd.f32 %v278, %v255
        %s295 = scalar_lea.vmem %s232, 8
        %v296 = vld [vmem:[%s295] sm:$0xff]
        %v297 = vadd.f32 %v296, %v293
        %298 = vst [vmem:[%s295] sm:$0xff] %v297
        %s299 = scalar_lea.vmem %s237, 8
        %v300 = vld [vmem:[%s299] sm:$0xff]
        %v301 = vadd.f32 %v300, %v294
        %302 = vst [vmem:[%s299] sm:$0xff] %v301
        %v303 = vmul.f32 %v279, %v256
        %v304 = vadd.f32 %v279, %v256
        %s305 = scalar_lea.vmem %s232, 16
        %v306 = vld [vmem:[%s305] sm:$0xff]
        %v307 = vadd.f32 %v306, %v303
        %308 = vst [vmem:[%s305] sm:$0xff] %v307
        %s309 = scalar_lea.vmem %s237, 16
        %v310 = vld [vmem:[%s309] sm:$0xff]
        %v311 = vadd.f32 %v310, %v304
        %312 = vst [vmem:[%s309] sm:$0xff] %v311
        %v313 = vmul.f32 %v280, %v257
        %v314 = vadd.f32 %v280, %v257
        %s315 = scalar_lea.vmem %s232, 24
        %v316 = vld [vmem:[%s315] sm:$0xff]
        %v317 = vadd.f32 %v316, %v313
        %318 = vst [vmem:[%s315] sm:$0xff] %v317
        %s319 = scalar_lea.vmem %s237, 24
        %v320 = vld [vmem:[%s319] sm:$0xff]
        %v321 = vadd.f32 %v320, %v314
        %322 = vst [vmem:[%s319] sm:$0xff] %v321
      $region36: #{dice_loss.1} parent=27 // pred_fallthru
        _
      // Predicated region
      $region37: #{dice_loss.1} parent=27 // pred_check
        %p323 = pneg %p238
      $region38: #{dice_loss.1} parent=27 // pred_check_branch
        %325 = sbr.rel (%p323) target = $region40
      $region39: #{dice_loss.1} parent=27 // pred_region
        %v326 = vlaneseq
        %v327 = vshrl.u32 %v326, 7
        %v328 = vlaneseq
        %v329 = vand.u32 %v328, 127
        %s330 = smul.u32 %s20, 8
        %v331 = vstv %s330
        %v332 = vadd.s32 %v331, %v327
        %v333 = vmul.u32 %v332, 128
        %v334 = vadd.s32 %v333, %v329
        %vm335 = vcmp.lt.s32.totalorder %v334, 256
        %v336 = vmul.f32 %v277, %v254
        %v337 = vadd.f32 %v277, %v254
        %v338 = vsel %vm335, %v337, 0.0
        %v339 = vld [vmem:[%s232] sm:$0xff]
        %v340 = vadd.f32 %v339, %v336
        %341 = vst [vmem:[%s232] sm:$0xff] %v340
        %v342 = vld [vmem:[%s237] sm:$0xff]
        %v343 = vadd.f32 %v342, %v338
        %344 = vst [vmem:[%s237] sm:$0xff] %v343
        %v345 = vmul.f32 %v278, %v255
        %v346 = vadd.f32 %v278, %v255
        %v347 = vsel %vm335, %v346, 0.0
        %s348 = scalar_lea.vmem %s232, 8
        %v349 = vld [vmem:[%s348] sm:$0xff]
        %v350 = vadd.f32 %v349, %v345
        %351 = vst [vmem:[%s348] sm:$0xff] %v350
        %s352 = scalar_lea.vmem %s237, 8
        %v353 = vld [vmem:[%s352] sm:$0xff]
        %v354 = vadd.f32 %v353, %v347
        %355 = vst [vmem:[%s352] sm:$0xff] %v354
        %v356 = vmul.f32 %v279, %v256
        %v357 = vadd.f32 %v279, %v256
        %v358 = vsel %vm335, %v357, 0.0
        %s359 = scalar_lea.vmem %s232, 16
        %v360 = vld [vmem:[%s359] sm:$0xff]
        %v361 = vadd.f32 %v360, %v356
        %362 = vst [vmem:[%s359] sm:$0xff] %v361
        %s363 = scalar_lea.vmem %s237, 16
        %v364 = vld [vmem:[%s363] sm:$0xff]
        %v365 = vadd.f32 %v364, %v358
        %366 = vst [vmem:[%s363] sm:$0xff] %v365
        %v367 = vmul.f32 %v280, %v257
        %v368 = vadd.f32 %v280, %v257
        %v369 = vsel %vm335, %v368, 0.0
        %s370 = scalar_lea.vmem %s232, 24
        %v371 = vld [vmem:[%s370] sm:$0xff]
        %v372 = vadd.f32 %v371, %v367
        %373 = vst [vmem:[%s370] sm:$0xff] %v372
        %s374 = scalar_lea.vmem %s237, 24
        %v375 = vld [vmem:[%s374] sm:$0xff]
        %v376 = vadd.f32 %v375, %v369
        %377 = vst [vmem:[%s374] sm:$0xff] %v376
      $region40: #{dice_loss.1} parent=27 // pred_fallthru
        _
      %p378 = scmp.lt.s32.totalorder %s19, 1
      %s379 = scalar_select %p378, %s19, 1
      %s380 = smul.addr %s379, 4
      %s381 = smul.addr %s380, 8
      %s382 = scalar_lea.vmem %s2, %s381
      %p383 = scmp.lt.s32.totalorder %s19, 1
      %s384 = scalar_select %p383, %s19, 1
      %s385 = smul.addr %s384, 4
      %s386 = smul.addr %s385, 8
      %s387 = scalar_lea.vmem %s3, %s386
      // Predicated region
      $region41: #{dice_loss.1} parent=27 // pred_check
        %p388 = pneg %p101
      $region42: #{dice_loss.1} parent=27 // pred_check_branch
        %390 = sbr.rel (%p388) target = $region44
      $region43: #{dice_loss.1} parent=27 // pred_region
        _
      $region44: #{dice_loss.1} parent=27 // pred_fallthru
        _
      // Predicated region
      $region45: #{dice_loss.1} parent=27 // pred_check
        %p391 = pneg %p127
      $region46: #{dice_loss.1} parent=27 // pred_check_branch
        %393 = sbr.rel (%p391) target = $region48
      $region47: #{dice_loss.1} parent=27 // pred_region
        _
      $region48: #{dice_loss.1} parent=27 // pred_fallthru
        _
    $region28: #{dice_loss.1} parent=5 // pred_fallthru
      _
    %p394 = scmp.le.s32.totalorder 2, %s10
    // Predicated region
    $region49: #{dice_loss.1} parent=5 // pred_check
      %p395 = pneg %p394
    $region50: #{dice_loss.1} parent=5 // pred_check_branch
      %397 = sbr.rel (%p395) target = $region52
    $region51: #{dice_loss.1} parent=5 // pred_region
      %s398 = ssub.s32 %s10, 2
      // Predicated region
      $region53: #{dice_loss.1} parent=51 // pred_check
        %p399 = pneg %p107
      $region54: #{dice_loss.1} parent=51 // pred_check_branch
        %401 = sbr.rel (%p399) target = $region56
      $region55: #{dice_loss.1} parent=51 // pred_region
        %p402 = scmp.lt.s32.totalorder %s21, 1
        %s403 = scalar_select %p402, %s21, 1
        %s404 = smul.addr %s403, 4
        %s405 = smul.addr %s404, 8
        %s406 = scalar_lea.vmem %s2, %s405
      $region56: #{dice_loss.1} parent=51 // pred_fallthru
        _
      // Predicated region
      $region57: #{dice_loss.1} parent=51 // pred_check
        %p407 = pneg %p133
      $region58: #{dice_loss.1} parent=51 // pred_check_branch
        %409 = sbr.rel (%p407) target = $region60
      $region59: #{dice_loss.1} parent=51 // pred_region
        %p410 = scmp.lt.s32.totalorder %s21, 1
        %s411 = scalar_select %p410, %s21, 1
        %s412 = smul.addr %s411, 4
        %s413 = smul.addr %s412, 8
        %s414 = scalar_lea.vmem %s3, %s413
      $region60: #{dice_loss.1} parent=51 // pred_fallthru
        _
    $region52: #{dice_loss.1} parent=5 // pred_fallthru
      _
  $region6: #{dice_loss.1} parent=0 // loop_footer
    %s14 = sadd.s32 1, %s10
  $region7: #{dice_loss.1} parent=0 // loop_footer_branch
    %9 = sbr.rel target = $region3
  $region8: #{dice_loss.1} parent=0 // loop_exit
    _

</llo_original>
